<compile_context>
chip_gen: v5e
topology: v5e:2x2
jax: 0.10.0
libtpu: 0.0.40
codegen_flags: <defaults>
</compile_context>

<pallas_src>
import functools
import math

import jax
import jax.numpy as jnp
from jax.experimental import pallas as pl
from jax.experimental.pallas import tpu as pltpu

_LANES = 128
_MAX_FOLD_LANES = 512            # widen lane folding up to this many lanes
_MIN_PALLAS_BYTES = 1 << 20      # below this, let XLA fuse the multiply


def _vd_kernel(x_ref, mask_ref, o_ref):
    # x_ref: (bb, ts, Hf) block, mask_ref: (bb, 1, Hf) -> broadcast over the
    # time tile (same dropout mask for every timestep). Multiply happens in
    # the promoted dtype (f32 mask x bf16/f32 x), cast on the store.
    o_ref[...] = (x_ref[...] * mask_ref[...]).astype(o_ref.dtype)


@functools.lru_cache(maxsize=1)
def _vmem_capacity_bytes() -> int:
    """Per-TensorCore VMEM capacity; conservative default if query fails."""
    try:
        return int(pltpu.get_tpu_info().vmem_capacity_bytes)
    except Exception:  # pragma: no cover - e.g. older jax / non-TPU tracing
        return 64 * 1024 * 1024  # v7x per-TC size (most restrictive)


def _block_budget():
    """(target block bytes, vmem_limit cap) sized per chip generation."""
    cap = _vmem_capacity_bytes()
    if cap >= 100 * 1024 * 1024:          # v5e / v6e: 128 MiB physical VMEM
        return 8 * 1024 * 1024, 96 * 1024 * 1024
    # v7x: 64 MiB per TensorCore -> keep double-buffered footprint <= ~48 MiB
    return 6 * 1024 * 1024, 48 * 1024 * 1024


def _lane_fold(S: int, H: int) -> int:
    """Timesteps to fold into the lane axis so H*k is a multiple of 128."""
    base = math.lcm(H, _LANES) // H       # minimal fold to hit a 128-multiple
    if base > 1 and S % base != 0:
        return 1
    k = base
    # Widen further (wider unmasked stores) while S still divides cleanly.
    while H * k * 2 <= _MAX_FOLD_LANES and S % (k * 2) == 0:
        k *= 2
    return k


def _sublane_granule(itemsize: int) -> int:
    # f32 -> 8, bf16 -> 16, int8/fp8 -> 32 (packed-row granularity).
    return 8 * max(1, 4 // itemsize)


def _pick_time_tile(S_f: int, ts_max: int, granule: int) -> int:
    """Largest granule-aligned tile <= ts_max, preferring divisors of S_f."""
    ts_max = min(ts_max, S_f)
    if ts_max >= S_f:
        return S_f
    t = max(granule, (ts_max // granule) * granule)
    cand = t
    while cand >= granule:                # prefer an exact divisor of S_f
        if S_f % cand == 0:
            return cand
        cand -= granule
    return t                              # fall back: ragged last tile


@functools.partial(jax.jit, static_argnames=("training", "force_pallas"))
def variational_dropout_forward(x, mask, *, training: bool = True,
                                force_pallas: bool = False):
    """Variational dropout forward: mask * x when training, identity otherwise.

    x:    (B, S, H)
    mask: (B, 1, H) (or broadcastable to it) -- reused for every timestep.
    """
    if not training:
        return x

    B, S, H = x.shape
    itemsize = jnp.dtype(x.dtype).itemsize
    total_bytes = B * S * H * itemsize
    mask = jnp.broadcast_to(mask, (B, 1, H))

    # Small-input fast path: a standalone pallas_call (dispatch + pipeline
    # prologue) costs far more than the data movement; let XLA fuse it.
    if total_bytes < _MIN_PALLAS_BYTES and not force_pallas:
        return (x * mask).astype(x.dtype)

    # ---- lane folding: make the last dim a (wide) multiple of 128 ---------
    k = _lane_fold(S, H)
    S_f, H_f = S // k, H * k
    x_f = x.reshape(B, S_f, H_f)
    # Same mask every timestep -> tiling it k times along the folded lane
    # axis preserves variational-dropout semantics exactly; stays tiny.
    mask_f = jnp.tile(mask, (1, 1, k)) if k > 1 else mask

    # ---- block sizing: ~6-8 MiB blocks, batch-blocked for small slabs ------
    target_block_bytes, vmem_cap = _block_budget()
    granule = _sublane_granule(itemsize)
    slab_bytes = S_f * H_f * itemsize                 # one batch's slab

    if slab_bytes <= target_block_bytes:
        bb = min(B, max(1, target_block_bytes // max(slab_bytes, 1)))
        while bb > 1 and B % bb != 0:                 # avoid ragged batch tile
            bb -= 1
        ts = S_f
    else:
        bb = 1
        ts_max = max(granule, target_block_bytes // (H_f * itemsize))
        ts = _pick_time_tile(S_f, ts_max, granule)

    grid = (pl.cdiv(B, bb), pl.cdiv(S_f, ts))

    # vmem_limit from the actual footprint: x + out blocks (double-buffered)
    # plus the tiny resident mask block, with headroom; capped per chip.
    x_block_bytes = bb * ts * H_f * itemsize
    mask_block_bytes = bb * H_f * jnp.dtype(mask.dtype).itemsize
    footprint = 4 * x_block_bytes + 2 * mask_block_bytes
    vmem_limit = int(min(vmem_cap, max(8 << 20, footprint + footprint // 4 + (2 << 20))))

    out = pl.pallas_call(
        _vd_kernel,
        out_shape=jax.ShapeDtypeStruct((B, S_f, H_f), x.dtype),
        grid=grid,
        in_specs=[
            pl.BlockSpec((bb, ts, H_f), lambda b, s: (b, s, 0)),
            # Same block index across the time-tile axis -> the per-batch mask
            # stays resident in VMEM instead of being re-fetched each step.
            pl.BlockSpec((bb, 1, H_f), lambda b, s: (b, 0, 0)),
        ],
        out_specs=pl.BlockSpec((bb, ts, H_f), lambda b, s: (b, s, 0)),
        compiler_params=pltpu.CompilerParams(
            # Both axes are independent -> Mosaic may shard the grid across
            # the 2 TensorCores on v7x; neutral on v5e/v6e.
            dimension_semantics=("parallel", "parallel"),
            vmem_limit_bytes=vmem_limit,
        ),
    )(x_f, mask_f)

    return out.reshape(B, S, H)


def update_mask(key, mask_shape, p, dtype=jnp.float32):
    """Equivalent of VariationalDropout.update_mask: bernoulli(1-p)/(1-p)."""
    keep = jax.random.bernoulli(key, 1.0 - p, mask_shape).astype(dtype)
    return keep / (1.0 - p)


if __name__ == "__main__":
    p = 0.25
    key = jax.random.PRNGKey(0)
    kx, kmask, kx2, kmask2 = jax.random.split(key, 4)

    # Shapes implied by the module's usage inside an unrolled LSTM:
    # batch=2, seq=8, hidden=32.  Same mask reused for all timesteps.
    B, S, H = 2, 8, 32
    x = jax.random.normal(kx, (B, S, H), dtype=jnp.float32)
    mask = update_mask(kmask, (B, 1, H), p, dtype=jnp.float32)

    # Training path through the Pallas kernel (force_pallas bypasses the
    # small-input XLA fast path so the kernel itself is exercised here).
    y = variational_dropout_forward(x, mask, training=True, force_pallas=True)
    y = jax.block_until_ready(y)
    ref = mask * x
    assert jnp.allclose(y, ref, atol=1e-6, rtol=1e-6), "training output mismatch"

    # Small-input fast path (plain XLA multiply) must agree too.
    y_fast = variational_dropout_forward(x, mask, training=True)
    y_fast = jax.block_until_ready(y_fast)
    assert jnp.allclose(y_fast, ref, atol=1e-6, rtol=1e-6), "fast-path mismatch"

    # Eval path (identity).
    y_eval = variational_dropout_forward(x, mask, training=False)
    y_eval = jax.block_until_ready(y_eval)
    assert jnp.allclose(y_eval, x), "eval output should be identity"

    # A second small shape exercising the generalized lane folding (H=96 ->
    # fold k=4 -> 384 lanes) and batch blocking (whole batches per block).
    B2, S2, H2 = 4, 64, 96
    x2 = jax.random.normal(kx2, (B2, S2, H2), dtype=jnp.float32)
    mask2 = update_mask(kmask2, (B2, 1, H2), p, dtype=jnp.float32)
    y2 = variational_dropout_forward(x2, mask2, training=True, force_pallas=True)
    y2 = jax.block_until_ready(y2)
    assert jnp.allclose(y2, mask2 * x2, atol=1e-6, rtol=1e-6), "folded-path mismatch"

    print("KERNEL_OK")
</pallas_src>

<mosaic_0001>
module attributes {stable_mosaic.version = 11 : i64} {
  func.func @_vd_kernel(%arg0: i32, %arg1: i32, %arg2: memref<2x1x256xf32, #tpu.memory_space<vmem>>, %arg3: memref<2x1x256xf32, #tpu.memory_space<vmem>>, %arg4: memref<2x1x256xf32, #tpu.memory_space<vmem>>) attributes {dimension_semantics = [#tpu.dimension_semantics<parallel>, #tpu.dimension_semantics<parallel>], iteration_bounds = array<i64: 1, 1>, scalar_prefetch = 0 : i64, scratch_operands = 0 : i64, tpu.core_type = #tpu.core_type<tc>, window_params = [{transform_indices = @transform_0, window_bounds = array<i64: 2, 1, 256>}, {transform_indices = @transform_1, window_bounds = array<i64: 2, 1, 256>}, {transform_indices = @transform_2, window_bounds = array<i64: 2, 1, 256>}]} {
    %c0 = arith.constant 0 : index
    %c0_0 = arith.constant 0 : index
    %c0_1 = arith.constant 0 : index
    %0 = vector.load %arg2[%c0, %c0_0, %c0_1] : memref<2x1x256xf32, #tpu.memory_space<vmem>>, vector<2x1x256xf32>
    %c0_2 = arith.constant 0 : index
    %c0_3 = arith.constant 0 : index
    %c0_4 = arith.constant 0 : index
    %1 = vector.load %arg3[%c0_2, %c0_3, %c0_4] : memref<2x1x256xf32, #tpu.memory_space<vmem>>, vector<2x1x256xf32>
    %2 = arith.mulf %0, %1 : vector<2x1x256xf32>
    %c0_5 = arith.constant 0 : index
    %c0_6 = arith.constant 0 : index
    %c0_7 = arith.constant 0 : index
    %3 = vector.load %arg4[%c0_5, %c0_6, %c0_7] : memref<2x1x256xf32, #tpu.memory_space<vmem>>, vector<2x1x256xf32>
    tpu.vector_store %arg4[%c0_5, %c0_6, %c0_7], %2 {strides = array<i32>} : memref<2x1x256xf32, #tpu.memory_space<vmem>>, vector<2x1x256xf32>,
    return
  }
  func.func @transform_0(%arg0: i32, %arg1: i32) -> (i32, i32, i32) {
    %c0_i32 = arith.constant 0 : i32
    %c0_i32_0 = arith.constant 0 : i32
    return %arg0, %arg1, %c0_i32 : i32, i32, i32
  }
  func.func @transform_1(%arg0: i32, %arg1: i32) -> (i32, i32, i32) {
    %c0_i32 = arith.constant 0 : i32
    %c0_i32_0 = arith.constant 0 : i32
    %c0_i32_1 = arith.constant 0 : i32
    return %arg0, %c0_i32, %c0_i32_0 : i32, i32, i32
  }
  func.func @transform_2(%arg0: i32, %arg1: i32) -> (i32, i32, i32) {
    %c0_i32 = arith.constant 0 : i32
    %c0_i32_0 = arith.constant 0 : i32
    return %arg0, %arg1, %c0_i32 : i32, i32, i32
  }
}

</mosaic_0001>

<llo_original>
// kernel: variational_dropout_forward.1
$region0: #{variational_dropout_forward.1}
  #allocation0 [shape = 'u32[]', space=smem, size = 0x4, offset = 0x4, fixed_abs, tag = 'smem constant byte address 0x4 - core index']
  #allocation1 [shape = 'u32[72,128]{1,0:T(1,128)}', space=vmem, size = 0x9000, scoped, tag = 'internal scratch']
  %s0 = inlined_call_operand.vmem [shape: f32[2,1,256], index: 0, kind: input, shape index: {}]
  %s1 = inlined_call_operand.vmem [shape: f32[2,1,256], index: 1, kind: input, shape index: {}]
  %s2 = inlined_call_operand.vmem [shape: f32[2,1,256], index: 2, kind: output, shape index: {}]
  %s3 = sld [smem:[#allocation0]]
  $region18: #{variational_dropout_forward.1} parent=0
    _
  %s5 = ssub.s32 1, %s3
  %s6 = scalar_select 0, %s5, %s3
  // Predicated region
  $region2: #{variational_dropout_forward.1} parent=0 // pred_check
    _
  $region3: #{variational_dropout_forward.1} parent=0 // pred_check_branch
    %8 = sbr.rel (0) target = $region5
  $region4: #{variational_dropout_forward.1} parent=0 // pred_region
    _
  $region5: #{variational_dropout_forward.1} parent=0 // pred_fallthru
    _
  // Predicated region
  $region6: #{variational_dropout_forward.1} parent=0 // pred_check
    _
  $region7: #{variational_dropout_forward.1} parent=0 // pred_check_branch
    %10 = sbr.rel (0) target = $region9
  $region8: #{variational_dropout_forward.1} parent=0 // pred_region
    _
  $region9: #{variational_dropout_forward.1} parent=0 // pred_fallthru
    _
  %v11 = vld [vmem:[%s0] sm:$0x3]
  %v12 = vld [vmem:[%s0 + $0x2] sm:$0x3]
  %v13 = vld [vmem:[%s1] sm:$0x3]
  %v14 = vld [vmem:[%s1 + $0x2] sm:$0x3]
  %v15 = vmul.f32 %v11, %v13
  %v16 = vmul.f32 %v12, %v14
  %v17 = vlaneseq
  %vm18 = vcmp.ge.s32.totalorder %v17, 0
  %vm19 = vcmp.lt.s32.totalorder %v17, 256
  %vm20 = vmand %vm18, %vm19
  %21 = vst.msk [vmem:[%s2] sm:$0x3] %vm20, %v15
  %22 = vst.msk [vmem:[%s2 + $0x2] sm:$0x3] %vm20, %v16
  // Predicated region
  $region10: #{variational_dropout_forward.1} parent=0 // pred_check
    _
  $region11: #{variational_dropout_forward.1} parent=0 // pred_check_branch
    %24 = sbr.rel (0) target = $region13
  $region12: #{variational_dropout_forward.1} parent=0 // pred_region
    _
  $region13: #{variational_dropout_forward.1} parent=0 // pred_fallthru
    _
  // Predicated region
  $region14: #{variational_dropout_forward.1} parent=0 // pred_check
    _
  $region15: #{variational_dropout_forward.1} parent=0 // pred_check_branch
    %26 = sbr.rel (0) target = $region17
  $region16: #{variational_dropout_forward.1} parent=0 // pred_region
    _
  $region17: #{variational_dropout_forward.1} parent=0 // pred_fallthru
    _

</llo_original>
